<compile_context>
chip_gen: v7x
topology: tpu7x:2x2x1
jax: 0.10.0
libtpu: 0.0.40
codegen_flags: <defaults>
</compile_context>

<pallas_src>
import functools

import jax
import jax.numpy as jnp
from jax.experimental import pallas as pl
from jax.experimental.pallas import tpu as pltpu


def _rbf_kernel(c_ref, d_ref, o_ref, *, sqrt_gamma: float):
    # Shared body for both layouts (plain broadcasting picks the right one):
    #   lane-dense (bins, N):  d_ref (1, TILE),  c_ref (BINS, 1) -> (BINS, TILE)
    #   torch      (N, bins):  d_ref (TILE, 1),  c_ref (1, BINS) -> (TILE, BINS)
    # c_ref already holds sqrt(gamma) * centers; scale d in-kernel (cheap: one
    # VALU mul per `bins` output elements), so per-output work is sub+mul+exp.
    diff = d_ref[...] * sqrt_gamma - c_ref[...]
    o_ref[...] = jnp.exp(-(diff * diff)).astype(o_ref.dtype)


def rbf_expansion(distance: jax.Array,
                  vmin: float = 0.0,
                  vmax: float = 8.0,
                  bins: int = 40,
                  lengthscale=None,
                  tile_n: int = 32768,
                  out_dtype=jnp.float32,
                  transposed_output: bool = False) -> jax.Array:
    """RBF expansion of a 1-D distance tensor.

    Default returns the torch layout (N, bins), emitted directly by the kernel
    (no XLA transpose pass).  `transposed_output=True` returns the lane-dense
    (bins, N) slab — fastest option for consumers that can take it.
    out_dtype=jnp.bfloat16 halves the dominant HBM write traffic (values are in
    (0, 1], ~2^-8 relative error); compute is always f32.
    """
    assert distance.ndim == 1, "expects a 1-D distance tensor, like the torch usage"
    n = distance.shape[0]
    lane = 128

    # Deterministic "buffers" of the torch module.
    if lengthscale is None:
        step = float(vmax - vmin) / float(bins - 1)      # mean(diff(centers))
        gamma = 1.0 / step
    else:
        gamma = 1.0 / float(lengthscale) ** 2
    sqrt_gamma = float(gamma) ** 0.5

    centers = jnp.linspace(float(vmin), float(vmax), bins, dtype=jnp.float32)
    centers_scaled = centers * jnp.float32(sqrt_gamma)   # bake sqrt(gamma) in

    itemsize = jnp.dtype(out_dtype).itemsize

    # ---------------- tile sizing ----------------
    n_ceil = max(lane, pl.cdiv(n, lane) * lane)
    tile = max(lane, (min(int(tile_n), n_ceil) // lane) * lane)

    if transposed_output:
        # (bins, tile) output block: real bytes = bins*tile*itemsize.
        # Keep each output buffer <= ~6 MiB (double-buffered ~12 MiB + input).
        budget = 6 * 1024 * 1024
        max_tile = max(lane, (budget // (bins * itemsize)) // lane * lane)
    else:
        # (tile, bins) output and (tile, 1) distance column are lane-padded to
        # 128 lanes in VMEM -> ~tile*128*itemsize + tile*128*4 bytes per buffer
        # pair; keep a pair <= ~8 MiB (double-buffered ~16 MiB).
        budget = 8 * 1024 * 1024
        per_row = 128 * itemsize + 128 * 4
        max_tile = max(lane, (budget // per_row) // lane * lane)
    tile = min(tile, max_tile)

    # v7x: the "parallel" grid axis shards across the 2 TensorCores; keep at
    # least 2 grid steps for non-tiny inputs so neither core idles.
    half = pl.cdiv(n, 2 * lane) * lane
    if half >= 1024:
        tile = min(tile, half)

    n_pad = pl.cdiv(n, tile) * tile
    grid = (n_pad // tile,)

    d = distance.astype(jnp.float32)
    if n_pad != n:
        d = jnp.pad(d, (0, n_pad - n))     # pad value irrelevant (sliced off)

    kernel = functools.partial(_rbf_kernel, sqrt_gamma=sqrt_gamma)
    cparams = pltpu.CompilerParams(
        dimension_semantics=("parallel",),
        vmem_limit_bytes=32 * 1024 * 1024,   # >= v5e default, <= every chip's VMEM
    )

    if transposed_output:
        # Lane-dense layout: centers on sublanes, distances on lanes -> unmasked vst.
        out = pl.pallas_call(
            kernel,
            out_shape=jax.ShapeDtypeStruct((bins, n_pad), out_dtype),
            grid=grid,
            in_specs=[
                pl.BlockSpec((bins, 1), lambda i: (0, 0)),   # constant block, fetched once
                pl.BlockSpec((1, tile), lambda i: (0, i)),   # distance row tile
            ],
            out_specs=pl.BlockSpec((bins, tile), lambda i: (0, i)),
            compiler_params=cparams,
        )(centers_scaled.reshape(bins, 1), d.reshape(1, n_pad))
        return out[:, :n]                                    # (bins, N)

    # Torch layout emitted directly: distances on sublanes, centers on lanes.
    out = pl.pallas_call(
        kernel,
        out_shape=jax.ShapeDtypeStruct((n_pad, bins), out_dtype),
        grid=grid,
        in_specs=[
            pl.BlockSpec((1, bins), lambda i: (0, 0)),       # constant block, fetched once
            pl.BlockSpec((tile, 1), lambda i: (i, 0)),       # distance column tile
        ],
        out_specs=pl.BlockSpec((tile, bins), lambda i: (i, 0)),
        compiler_params=cparams,
    )(centers_scaled.reshape(1, bins), d.reshape(n_pad, 1))
    return out[:n, :]                                        # (N, bins)


def _reference(distance, vmin=0.0, vmax=8.0, bins=40, lengthscale=None):
    centers = jnp.linspace(vmin, vmax, bins, dtype=jnp.float32)
    if lengthscale is None:
        gamma = 1.0 / ((vmax - vmin) / (bins - 1))
    else:
        gamma = 1.0 / float(lengthscale) ** 2
    d = distance.astype(jnp.float32)[:, None]
    return jnp.exp(-gamma * (d - centers[None, :]) ** 2)


if __name__ == "__main__":
    key = jax.random.PRNGKey(0)
    BINS = 40

    # Case 1: small, lane-aligned N, default torch layout (no transpose pass).
    N1 = 256
    d1 = jax.random.uniform(key, (N1,), minval=0.0, maxval=8.0, dtype=jnp.float32)
    out1 = jax.block_until_ready(rbf_expansion(d1, vmin=0.0, vmax=8.0, bins=BINS))
    ref1 = _reference(d1, bins=BINS)
    assert out1.shape == (N1, BINS)
    assert jnp.allclose(out1, ref1, atol=1e-5, rtol=1e-5), "mismatch vs reference (N=256)"

    # Case 2: N not a multiple of 128 — exercises cdiv + padding path.
    N2 = 203
    d2 = jax.random.uniform(jax.random.PRNGKey(1), (N2,), minval=0.0, maxval=8.0,
                            dtype=jnp.float32)
    out2 = jax.block_until_ready(rbf_expansion(d2, vmin=0.0, vmax=8.0, bins=BINS))
    ref2 = _reference(d2, bins=BINS)
    assert out2.shape == (N2, BINS)
    assert jnp.allclose(out2, ref2, atol=1e-5, rtol=1e-5), "mismatch vs reference (N=203)"

    # Case 3: lane-dense transposed output (fastest layout).
    out3 = jax.block_until_ready(
        rbf_expansion(d1, vmin=0.0, vmax=8.0, bins=BINS, transposed_output=True))
    assert out3.shape == (BINS, N1)
    assert jnp.allclose(out3.T, ref1, atol=1e-5, rtol=1e-5), "mismatch (transposed)"

    # Case 4: bf16 output (halves HBM write traffic); looser tolerance (~2^-8 rel).
    out4 = jax.block_until_ready(
        rbf_expansion(d2, vmin=0.0, vmax=8.0, bins=BINS, out_dtype=jnp.bfloat16))
    assert out4.shape == (N2, BINS)
    assert jnp.allclose(out4.astype(jnp.float32), ref2, atol=4e-3, rtol=4e-3), \
        "mismatch vs reference (bf16 output)"

    print("KERNEL_OK")
</pallas_src>

<mosaic_0001>
module attributes {stable_mosaic.version = 11 : i64} {
  func.func @_rbf_kernel(%arg0: i32, %arg1: memref<1x40xf32, #tpu.memory_space<vmem>>, %arg2: memref<256x1xf32, #tpu.memory_space<vmem>>, %arg3: memref<256x40xf32, #tpu.memory_space<vmem>>) attributes {dimension_semantics = [#tpu.dimension_semantics<parallel>], iteration_bounds = array<i64: 1>, scalar_prefetch = 0 : i64, scratch_operands = 0 : i64, tpu.core_type = #tpu.core_type<tc>, window_params = [{pipeline_mode = #tpu.pipeline_mode<synchronous>, transform_indices = @transform_0, window_bounds = array<i64: 1, 40>}, {transform_indices = @transform_1, window_bounds = array<i64: 256, 1>}, {transform_indices = @transform_2, window_bounds = array<i64: 256, 40>}]} {
    %c0 = arith.constant 0 : index
    %c0_0 = arith.constant 0 : index
    %0 = vector.load %arg2[%c0, %c0_0] : memref<256x1xf32, #tpu.memory_space<vmem>>, vector<256x1xf32>
    %cst = arith.constant 2.207940e+00 : f32
    %1 = vector.broadcast %cst : f32 to vector<256x1xf32>
    %2 = arith.mulf %0, %1 : vector<256x1xf32>
    %c0_1 = arith.constant 0 : index
    %c0_2 = arith.constant 0 : index
    %3 = vector.load %arg1[%c0_1, %c0_2] : memref<1x40xf32, #tpu.memory_space<vmem>>, vector<1x40xf32>
    %4 = vector.broadcast %2 : vector<256x1xf32> to vector<256x40xf32>
    %5 = vector.broadcast %3 : vector<1x40xf32> to vector<256x40xf32>
    %6 = arith.subf %4, %5 : vector<256x40xf32>
    %7 = arith.mulf %6, %6 : vector<256x40xf32>
    %cst_3 = arith.constant 0.000000e+00 : f32
    %8 = vector.broadcast %cst_3 : f32 to vector<256x40xf32>
    %9 = arith.subf %8, %7 : vector<256x40xf32>
    %10 = math.exp %9 : vector<256x40xf32>
    %c0_4 = arith.constant 0 : index
    %c0_5 = arith.constant 0 : index
    %11 = vector.load %arg3[%c0_4, %c0_5] : memref<256x40xf32, #tpu.memory_space<vmem>>, vector<256x40xf32>
    tpu.vector_store %arg3[%c0_4, %c0_5], %10 {strides = array<i32>} : memref<256x40xf32, #tpu.memory_space<vmem>>, vector<256x40xf32>,
    return
  }
  func.func @transform_0(%arg0: i32) -> (i32, i32) {
    %c0_i32 = arith.constant 0 : i32
    %c0_i32_0 = arith.constant 0 : i32
    %c0_i32_1 = arith.constant 0 : i32
    return %c0_i32, %c0_i32_0 : i32, i32
  }
  func.func @transform_1(%arg0: i32) -> (i32, i32) {
    %c0_i32 = arith.constant 0 : i32
    %c0_i32_0 = arith.constant 0 : i32
    return %arg0, %c0_i32 : i32, i32
  }
  func.func @transform_2(%arg0: i32) -> (i32, i32) {
    %c0_i32 = arith.constant 0 : i32
    %c0_i32_0 = arith.constant 0 : i32
    return %arg0, %c0_i32 : i32, i32
  }
}

</mosaic_0001>

<llo_original>
// kernel: tpu_custom_call.1
$region0: #{tpu_custom_call.1}
  #allocation0 [shape = 'u32[]', space=smem, size = 0x4, offset = 0x4, fixed_abs, tag = 'smem constant byte address 0x4 - core index']
  #allocation1 [shape = 'u32[144,128]{1,0:T(1,128)}', space=vmem, size = 0x12000, scoped, tag = 'internal scratch']
  %s0 = inlined_call_operand.vmem [shape: f32[1,40], index: 0, kind: input, shape index: {}]
  %s1 = inlined_call_operand.vmem [shape: f32[256,1], index: 1, kind: input, shape index: {}]
  %s2 = inlined_call_operand.vmem [shape: f32[256,40], index: 2, kind: output, shape index: {}]
  %s3 = sld [smem:[#allocation0]]
  $region18: #{tpu_custom_call.1} parent=0
    _
  %s5 = ssub.s32 1, %s3
  %s6 = scalar_select 0, %s5, %s3
  // Predicated region
  $region2: #{tpu_custom_call.1} parent=0 // pred_check
    _
  $region3: #{tpu_custom_call.1} parent=0 // pred_check_branch
    %8 = sbr.rel (0) target = $region5
  $region4: #{tpu_custom_call.1} parent=0 // pred_region
    _
  $region5: #{tpu_custom_call.1} parent=0 // pred_fallthru
    _
  // Predicated region
  $region6: #{tpu_custom_call.1} parent=0 // pred_check
    _
  $region7: #{tpu_custom_call.1} parent=0 // pred_check_branch
    %10 = sbr.rel (0) target = $region9
  $region8: #{tpu_custom_call.1} parent=0 // pred_region
    _
  $region9: #{tpu_custom_call.1} parent=0 // pred_fallthru
    _
  %v11 = vld [vmem:[%s1] sm:$0xff]
  %v12 = vld [vmem:[%s1 + $0x8] sm:$0xff]
  %v13 = vld [vmem:[%s1 + $0x10] sm:$0xff]
  %v14 = vld [vmem:[%s1 + $0x18] sm:$0xff]
  %v15 = vld [vmem:[%s1 + $0x20] sm:$0xff]
  %v16 = vld [vmem:[%s1 + $0x28] sm:$0xff]
  %v17 = vld [vmem:[%s1 + $0x30] sm:$0xff]
  %v18 = vld [vmem:[%s1 + $0x38] sm:$0xff]
  %v19 = vld [vmem:[%s1 + $0x40] sm:$0xff]
  %v20 = vld [vmem:[%s1 + $0x48] sm:$0xff]
  %v21 = vld [vmem:[%s1 + $0x50] sm:$0xff]
  %v22 = vld [vmem:[%s1 + $0x58] sm:$0xff]
  %v23 = vld [vmem:[%s1 + $0x60] sm:$0xff]
  %v24 = vld [vmem:[%s1 + $0x68] sm:$0xff]
  %v25 = vld [vmem:[%s1 + $0x70] sm:$0xff]
  %v26 = vld [vmem:[%s1 + $0x78] sm:$0xff]
  %v27 = vld [vmem:[%s1 + $0x80] sm:$0xff]
  %v28 = vld [vmem:[%s1 + $0x88] sm:$0xff]
  %v29 = vld [vmem:[%s1 + $0x90] sm:$0xff]
  %v30 = vld [vmem:[%s1 + $0x98] sm:$0xff]
  %v31 = vld [vmem:[%s1 + $0xa0] sm:$0xff]
  %v32 = vld [vmem:[%s1 + $0xa8] sm:$0xff]
  %v33 = vld [vmem:[%s1 + $0xb0] sm:$0xff]
  %v34 = vld [vmem:[%s1 + $0xb8] sm:$0xff]
  %v35 = vld [vmem:[%s1 + $0xc0] sm:$0xff]
  %v36 = vld [vmem:[%s1 + $0xc8] sm:$0xff]
  %v37 = vld [vmem:[%s1 + $0xd0] sm:$0xff]
  %v38 = vld [vmem:[%s1 + $0xd8] sm:$0xff]
  %v39 = vld [vmem:[%s1 + $0xe0] sm:$0xff]
  %v40 = vld [vmem:[%s1 + $0xe8] sm:$0xff]
  %v41 = vld [vmem:[%s1 + $0xf0] sm:$0xff]
  %v42 = vld [vmem:[%s1 + $0xf8] sm:$0xff]
  %v43 = vmul.f32 %v11, 2.20794
  %v44 = vmul.f32 %v12, 2.20794
  %v45 = vmul.f32 %v13, 2.20794
  %v46 = vmul.f32 %v14, 2.20794
  %v47 = vmul.f32 %v15, 2.20794
  %v48 = vmul.f32 %v16, 2.20794
  %v49 = vmul.f32 %v17, 2.20794
  %v50 = vmul.f32 %v18, 2.20794
  %v51 = vmul.f32 %v19, 2.20794
  %v52 = vmul.f32 %v20, 2.20794
  %v53 = vmul.f32 %v21, 2.20794
  %v54 = vmul.f32 %v22, 2.20794
  %v55 = vmul.f32 %v23, 2.20794
  %v56 = vmul.f32 %v24, 2.20794
  %v57 = vmul.f32 %v25, 2.20794
  %v58 = vmul.f32 %v26, 2.20794
  %v59 = vmul.f32 %v27, 2.20794
  %v60 = vmul.f32 %v28, 2.20794
  %v61 = vmul.f32 %v29, 2.20794
  %v62 = vmul.f32 %v30, 2.20794
  %v63 = vmul.f32 %v31, 2.20794
  %v64 = vmul.f32 %v32, 2.20794
  %v65 = vmul.f32 %v33, 2.20794
  %v66 = vmul.f32 %v34, 2.20794
  %v67 = vmul.f32 %v35, 2.20794
  %v68 = vmul.f32 %v36, 2.20794
  %v69 = vmul.f32 %v37, 2.20794
  %v70 = vmul.f32 %v38, 2.20794
  %v71 = vmul.f32 %v39, 2.20794
  %v72 = vmul.f32 %v40, 2.20794
  %v73 = vmul.f32 %v41, 2.20794
  %v74 = vmul.f32 %v42, 2.20794
  %v75 = vld [vmem:[%s0] sm:$0x1]
  %77 = vset.pattern.permute.xlu0 0
  %78 = vperm.xlu0 %77, %v43
  %v79 = vpop.permute.xlu0 %78
  %82 = vset.pattern.permute.xlu0 0
  %83 = vperm.xlu0 %82, %v44
  %v84 = vpop.permute.xlu0 %83
  %87 = vset.pattern.permute.xlu0 0
  %88 = vperm.xlu0 %87, %v45
  %v89 = vpop.permute.xlu0 %88
  %92 = vset.pattern.permute.xlu0 0
  %93 = vperm.xlu0 %92, %v46
  %v94 = vpop.permute.xlu0 %93
  %97 = vset.pattern.permute.xlu0 0
  %98 = vperm.xlu0 %97, %v47
  %v99 = vpop.permute.xlu0 %98
  %102 = vset.pattern.permute.xlu0 0
  %103 = vperm.xlu0 %102, %v48
  %v104 = vpop.permute.xlu0 %103
  %107 = vset.pattern.permute.xlu0 0
  %108 = vperm.xlu0 %107, %v49
  %v109 = vpop.permute.xlu0 %108
  %112 = vset.pattern.permute.xlu0 0
  %113 = vperm.xlu0 %112, %v50
  %v114 = vpop.permute.xlu0 %113
  %117 = vset.pattern.permute.xlu0 0
  %118 = vperm.xlu0 %117, %v51
  %v119 = vpop.permute.xlu0 %118
  %122 = vset.pattern.permute.xlu0 0
  %123 = vperm.xlu0 %122, %v52
  %v124 = vpop.permute.xlu0 %123
  %127 = vset.pattern.permute.xlu0 0
  %128 = vperm.xlu0 %127, %v53
  %v129 = vpop.permute.xlu0 %128
  %132 = vset.pattern.permute.xlu0 0
  %133 = vperm.xlu0 %132, %v54
  %v134 = vpop.permute.xlu0 %133
  %137 = vset.pattern.permute.xlu0 0
  %138 = vperm.xlu0 %137, %v55
  %v139 = vpop.permute.xlu0 %138
  %142 = vset.pattern.permute.xlu0 0
  %143 = vperm.xlu0 %142, %v56
  %v144 = vpop.permute.xlu0 %143
  %147 = vset.pattern.permute.xlu0 0
  %148 = vperm.xlu0 %147, %v57
  %v149 = vpop.permute.xlu0 %148
  %152 = vset.pattern.permute.xlu0 0
  %153 = vperm.xlu0 %152, %v58
  %v154 = vpop.permute.xlu0 %153
  %157 = vset.pattern.permute.xlu0 0
  %158 = vperm.xlu0 %157, %v59
  %v159 = vpop.permute.xlu0 %158
  %162 = vset.pattern.permute.xlu0 0
  %163 = vperm.xlu0 %162, %v60
  %v164 = vpop.permute.xlu0 %163
  %167 = vset.pattern.permute.xlu0 0
  %168 = vperm.xlu0 %167, %v61
  %v169 = vpop.permute.xlu0 %168
  %172 = vset.pattern.permute.xlu0 0
  %173 = vperm.xlu0 %172, %v62
  %v174 = vpop.permute.xlu0 %173
  %177 = vset.pattern.permute.xlu0 0
  %178 = vperm.xlu0 %177, %v63
  %v179 = vpop.permute.xlu0 %178
  %182 = vset.pattern.permute.xlu0 0
  %183 = vperm.xlu0 %182, %v64
  %v184 = vpop.permute.xlu0 %183
  %187 = vset.pattern.permute.xlu0 0
  %188 = vperm.xlu0 %187, %v65
  %v189 = vpop.permute.xlu0 %188
  %192 = vset.pattern.permute.xlu0 0
  %193 = vperm.xlu0 %192, %v66
  %v194 = vpop.permute.xlu0 %193
  %197 = vset.pattern.permute.xlu0 0
  %198 = vperm.xlu0 %197, %v67
  %v199 = vpop.permute.xlu0 %198
  %202 = vset.pattern.permute.xlu0 0
  %203 = vperm.xlu0 %202, %v68
  %v204 = vpop.permute.xlu0 %203
  %207 = vset.pattern.permute.xlu0 0
  %208 = vperm.xlu0 %207, %v69
  %v209 = vpop.permute.xlu0 %208
  %212 = vset.pattern.permute.xlu0 0
  %213 = vperm.xlu0 %212, %v70
  %v214 = vpop.permute.xlu0 %213
  %217 = vset.pattern.permute.xlu0 0
  %218 = vperm.xlu0 %217, %v71
  %v219 = vpop.permute.xlu0 %218
  %222 = vset.pattern.permute.xlu0 0
  %223 = vperm.xlu0 %222, %v72
  %v224 = vpop.permute.xlu0 %223
  %227 = vset.pattern.permute.xlu0 0
  %228 = vperm.xlu0 %227, %v73
  %v229 = vpop.permute.xlu0 %228
  %232 = vset.pattern.permute.xlu0 0
  %233 = vperm.xlu0 %232, %v74
  %v234 = vpop.permute.xlu0 %233
  %v237 = vlaneseq
  %v238 = vshrl.u32 %v237, 7
  %v239 = vsub.s32 0, %v238
  %v240 = vrot.slane %v75, %v239
  %v242 = vsub.f32 %v79, %v240
  %v243 = vsub.f32 %v84, %v240
  %v244 = vsub.f32 %v89, %v240
  %v245 = vsub.f32 %v94, %v240
  %v246 = vsub.f32 %v99, %v240
  %v247 = vsub.f32 %v104, %v240
  %v248 = vsub.f32 %v109, %v240
  %v249 = vsub.f32 %v114, %v240
  %v250 = vsub.f32 %v119, %v240
  %v251 = vsub.f32 %v124, %v240
  %v252 = vsub.f32 %v129, %v240
  %v253 = vsub.f32 %v134, %v240
  %v254 = vsub.f32 %v139, %v240
  %v255 = vsub.f32 %v144, %v240
  %v256 = vsub.f32 %v149, %v240
  %v257 = vsub.f32 %v154, %v240
  %v258 = vsub.f32 %v159, %v240
  %v259 = vsub.f32 %v164, %v240
  %v260 = vsub.f32 %v169, %v240
  %v261 = vsub.f32 %v174, %v240
  %v262 = vsub.f32 %v179, %v240
  %v263 = vsub.f32 %v184, %v240
  %v264 = vsub.f32 %v189, %v240
  %v265 = vsub.f32 %v194, %v240
  %v266 = vsub.f32 %v199, %v240
  %v267 = vsub.f32 %v204, %v240
  %v268 = vsub.f32 %v209, %v240
  %v269 = vsub.f32 %v214, %v240
  %v270 = vsub.f32 %v219, %v240
  %v271 = vsub.f32 %v224, %v240
  %v272 = vsub.f32 %v229, %v240
  %v273 = vsub.f32 %v234, %v240
  %v274 = vmul.f32 %v242, %v242
  %v275 = vmul.f32 %v243, %v243
  %v276 = vmul.f32 %v244, %v244
  %v277 = vmul.f32 %v245, %v245
  %v278 = vmul.f32 %v246, %v246
  %v279 = vmul.f32 %v247, %v247
  %v280 = vmul.f32 %v248, %v248
  %v281 = vmul.f32 %v249, %v249
  %v282 = vmul.f32 %v250, %v250
  %v283 = vmul.f32 %v251, %v251
  %v284 = vmul.f32 %v252, %v252
  %v285 = vmul.f32 %v253, %v253
  %v286 = vmul.f32 %v254, %v254
  %v287 = vmul.f32 %v255, %v255
  %v288 = vmul.f32 %v256, %v256
  %v289 = vmul.f32 %v257, %v257
  %v290 = vmul.f32 %v258, %v258
  %v291 = vmul.f32 %v259, %v259
  %v292 = vmul.f32 %v260, %v260
  %v293 = vmul.f32 %v261, %v261
  %v294 = vmul.f32 %v262, %v262
  %v295 = vmul.f32 %v263, %v263
  %v296 = vmul.f32 %v264, %v264
  %v297 = vmul.f32 %v265, %v265
  %v298 = vmul.f32 %v266, %v266
  %v299 = vmul.f32 %v267, %v267
  %v300 = vmul.f32 %v268, %v268
  %v301 = vmul.f32 %v269, %v269
  %v302 = vmul.f32 %v270, %v270
  %v303 = vmul.f32 %v271, %v271
  %v304 = vmul.f32 %v272, %v272
  %v305 = vmul.f32 %v273, %v273
  %v306 = vsub.f32 0.0, %v274
  %v307 = vsub.f32 0.0, %v275
  %v308 = vsub.f32 0.0, %v276
  %v309 = vsub.f32 0.0, %v277
  %v310 = vsub.f32 0.0, %v278
  %v311 = vsub.f32 0.0, %v279
  %v312 = vsub.f32 0.0, %v280
  %v313 = vsub.f32 0.0, %v281
  %v314 = vsub.f32 0.0, %v282
  %v315 = vsub.f32 0.0, %v283
  %v316 = vsub.f32 0.0, %v284
  %v317 = vsub.f32 0.0, %v285
  %v318 = vsub.f32 0.0, %v286
  %v319 = vsub.f32 0.0, %v287
  %v320 = vsub.f32 0.0, %v288
  %v321 = vsub.f32 0.0, %v289
  %v322 = vsub.f32 0.0, %v290
  %v323 = vsub.f32 0.0, %v291
  %v324 = vsub.f32 0.0, %v292
  %v325 = vsub.f32 0.0, %v293
  %v326 = vsub.f32 0.0, %v294
  %v327 = vsub.f32 0.0, %v295
  %v328 = vsub.f32 0.0, %v296
  %v329 = vsub.f32 0.0, %v297
  %v330 = vsub.f32 0.0, %v298
  %v331 = vsub.f32 0.0, %v299
  %v332 = vsub.f32 0.0, %v300
  %v333 = vsub.f32 0.0, %v301
  %v334 = vsub.f32 0.0, %v302
  %v335 = vsub.f32 0.0, %v303
  %v336 = vsub.f32 0.0, %v304
  %v337 = vsub.f32 0.0, %v305
  %v338 = vmul.f32 %v306, 1.442695
  %v339 = vpow.pop %v338
  %v340 = vmul.f32 %v307, 1.442695
  %v341 = vpow.pop %v340
  %v342 = vmul.f32 %v308, 1.442695
  %v343 = vpow.pop %v342
  %v344 = vmul.f32 %v309, 1.442695
  %v345 = vpow.pop %v344
  %v346 = vmul.f32 %v310, 1.442695
  %v347 = vpow.pop %v346
  %v348 = vmul.f32 %v311, 1.442695
  %v349 = vpow.pop %v348
  %v350 = vmul.f32 %v312, 1.442695
  %v351 = vpow.pop %v350
  %v352 = vmul.f32 %v313, 1.442695
  %v353 = vpow.pop %v352
  %v354 = vmul.f32 %v314, 1.442695
  %v355 = vpow.pop %v354
  %v356 = vmul.f32 %v315, 1.442695
  %v357 = vpow.pop %v356
  %v358 = vmul.f32 %v316, 1.442695
  %v359 = vpow.pop %v358
  %v360 = vmul.f32 %v317, 1.442695
  %v361 = vpow.pop %v360
  %v362 = vmul.f32 %v318, 1.442695
  %v363 = vpow.pop %v362
  %v364 = vmul.f32 %v319, 1.442695
  %v365 = vpow.pop %v364
  %v366 = vmul.f32 %v320, 1.442695
  %v367 = vpow.pop %v366
  %v368 = vmul.f32 %v321, 1.442695
  %v369 = vpow.pop %v368
  %v370 = vmul.f32 %v322, 1.442695
  %v371 = vpow.pop %v370
  %v372 = vmul.f32 %v323, 1.442695
  %v373 = vpow.pop %v372
  %v374 = vmul.f32 %v324, 1.442695
  %v375 = vpow.pop %v374
  %v376 = vmul.f32 %v325, 1.442695
  %v377 = vpow.pop %v376
  %v378 = vmul.f32 %v326, 1.442695
  %v379 = vpow.pop %v378
  %v380 = vmul.f32 %v327, 1.442695
  %v381 = vpow.pop %v380
  %v382 = vmul.f32 %v328, 1.442695
  %v383 = vpow.pop %v382
  %v384 = vmul.f32 %v329, 1.442695
  %v385 = vpow.pop %v384
  %v386 = vmul.f32 %v330, 1.442695
  %v387 = vpow.pop %v386
  %v388 = vmul.f32 %v331, 1.442695
  %v389 = vpow.pop %v388
  %v390 = vmul.f32 %v332, 1.442695
  %v391 = vpow.pop %v390
  %v392 = vmul.f32 %v333, 1.442695
  %v393 = vpow.pop %v392
  %v394 = vmul.f32 %v334, 1.442695
  %v395 = vpow.pop %v394
  %v396 = vmul.f32 %v335, 1.442695
  %v397 = vpow.pop %v396
  %v398 = vmul.f32 %v336, 1.442695
  %v399 = vpow.pop %v398
  %v400 = vmul.f32 %v337, 1.442695
  %v401 = vpow.pop %v400
  %vm402 = vcmask 326656
  %403 = vst.msk [vmem:[%s2] sm:$0xff] %vm402, %v339
  %404 = vst.msk [vmem:[%s2 + $0x8] sm:$0xff] %vm402, %v341
  %405 = vst.msk [vmem:[%s2 + $0x10] sm:$0xff] %vm402, %v343
  %406 = vst.msk [vmem:[%s2 + $0x18] sm:$0xff] %vm402, %v345
  %407 = vst.msk [vmem:[%s2 + $0x20] sm:$0xff] %vm402, %v347
  %408 = vst.msk [vmem:[%s2 + $0x28] sm:$0xff] %vm402, %v349
  %409 = vst.msk [vmem:[%s2 + $0x30] sm:$0xff] %vm402, %v351
  %410 = vst.msk [vmem:[%s2 + $0x38] sm:$0xff] %vm402, %v353
  %411 = vst.msk [vmem:[%s2 + $0x40] sm:$0xff] %vm402, %v355
  %412 = vst.msk [vmem:[%s2 + $0x48] sm:$0xff] %vm402, %v357
  %413 = vst.msk [vmem:[%s2 + $0x50] sm:$0xff] %vm402, %v359
  %414 = vst.msk [vmem:[%s2 + $0x58] sm:$0xff] %vm402, %v361
  %415 = vst.msk [vmem:[%s2 + $0x60] sm:$0xff] %vm402, %v363
  %416 = vst.msk [vmem:[%s2 + $0x68] sm:$0xff] %vm402, %v365
  %417 = vst.msk [vmem:[%s2 + $0x70] sm:$0xff] %vm402, %v367
  %418 = vst.msk [vmem:[%s2 + $0x78] sm:$0xff] %vm402, %v369
  %419 = vst.msk [vmem:[%s2 + $0x80] sm:$0xff] %vm402, %v371
  %420 = vst.msk [vmem:[%s2 + $0x88] sm:$0xff] %vm402, %v373
  %421 = vst.msk [vmem:[%s2 + $0x90] sm:$0xff] %vm402, %v375
  %422 = vst.msk [vmem:[%s2 + $0x98] sm:$0xff] %vm402, %v377
  %423 = vst.msk [vmem:[%s2 + $0xa0] sm:$0xff] %vm402, %v379
  %424 = vst.msk [vmem:[%s2 + $0xa8] sm:$0xff] %vm402, %v381
  %425 = vst.msk [vmem:[%s2 + $0xb0] sm:$0xff] %vm402, %v383
  %426 = vst.msk [vmem:[%s2 + $0xb8] sm:$0xff] %vm402, %v385
  %427 = vst.msk [vmem:[%s2 + $0xc0] sm:$0xff] %vm402, %v387
  %428 = vst.msk [vmem:[%s2 + $0xc8] sm:$0xff] %vm402, %v389
  %429 = vst.msk [vmem:[%s2 + $0xd0] sm:$0xff] %vm402, %v391
  %430 = vst.msk [vmem:[%s2 + $0xd8] sm:$0xff] %vm402, %v393
  %431 = vst.msk [vmem:[%s2 + $0xe0] sm:$0xff] %vm402, %v395
  %432 = vst.msk [vmem:[%s2 + $0xe8] sm:$0xff] %vm402, %v397
  %433 = vst.msk [vmem:[%s2 + $0xf0] sm:$0xff] %vm402, %v399
  %434 = vst.msk [vmem:[%s2 + $0xf8] sm:$0xff] %vm402, %v401
  // Predicated region
  $region10: #{tpu_custom_call.1} parent=0 // pred_check
    _
  $region11: #{tpu_custom_call.1} parent=0 // pred_check_branch
    %436 = sbr.rel (0) target = $region13
  $region12: #{tpu_custom_call.1} parent=0 // pred_region
    _
  $region13: #{tpu_custom_call.1} parent=0 // pred_fallthru
    _
  // Predicated region
  $region14: #{tpu_custom_call.1} parent=0 // pred_check
    _
  $region15: #{tpu_custom_call.1} parent=0 // pred_check_branch
    %438 = sbr.rel (0) target = $region17
  $region16: #{tpu_custom_call.1} parent=0 // pred_region
    _
  $region17: #{tpu_custom_call.1} parent=0 // pred_fallthru
    _

</llo_original>
